<compile_context>
chip_gen: v5e
topology: v5e:2x2
jax: 0.10.0
libtpu: 0.0.40
codegen_flags: <defaults>
</compile_context>

<pallas_src>
import functools

import jax
import jax.numpy as jnp
from jax.experimental import pallas as pl
from jax.experimental.pallas import tpu as pltpu


# --------------------------------------------------------------------------
# Fused kernel: one grid step == one block of BM batch elements.
# --------------------------------------------------------------------------
def _fused_segment_kernel(*refs, num_levels):
    # refs = (x,
    #         pool_1..pool_{L-1}, expand_1..expand_{L-1}, avg,
    #         [enc_w, enc_b] * L, [dec_wf, dec_ws, dec_b] * (L-1),
    #         out)
    x_ref = refs[0]                                     # (BM*n_leaf, in_dim) f32
    pool_refs = refs[1:num_levels]                      # bf16, block-diag over batch
    exp_refs = refs[num_levels:2 * num_levels - 1]      # bf16, block-diag over batch
    avg_ref = refs[2 * num_levels - 1]                  # f32,  block-diag over batch
    w_start = 2 * num_levels
    enc_refs = refs[w_start:w_start + 2 * num_levels]
    dec_refs = refs[w_start + 2 * num_levels:-1]
    o_ref = refs[-1]                                    # (BM*S, out_dim) f32

    def bdot(a, b):
        # bf16 MXU operands, f32 accumulation (correct & fast on v5e/v6e/v7x).
        return jnp.dot(a.astype(jnp.bfloat16), b.astype(jnp.bfloat16),
                       preferred_element_type=jnp.float32)

    # ---- encoder (leaf-first): leaf MLP, then pool pairs + MLP per level ----
    h = x_ref[...]                                      # (BM*n_leaf, in_dim)
    feats = []
    for l in range(num_levels):
        if l > 0:
            # parent j = mean(children 2j, 2j+1), precomputed selection matmul
            h = bdot(pool_refs[l - 1][...], h)
        h = jnp.maximum(bdot(h, enc_refs[2 * l][...]) + enc_refs[2 * l + 1][...],
                        0.0)
        feats.append(h)

    # ---- decoder, root-first: push_down[0] is Identity ----
    ans = feats[-1]                                     # root features
    for i in range(1, num_levels):
        f = feats[num_levels - 1 - i]
        wf, ws, b = dec_refs[3 * (i - 1):3 * i]
        # cat([features, scattered]) @ W == features @ W_f + scattered @ W_s,
        # and scatter (row duplication) commutes with W_s: apply ws first on
        # the (smaller) parent rows, then duplicate to children.
        t = bdot(ans, ws[...])                          # (BM*n_parent, d_out)
        scat = bdot(exp_refs[i - 1][...], t)            # (BM*n_child,  d_out)
        ans = jnp.maximum(bdot(f, wf[...]) + scat + b[...], 0.0)
    # ans: (BM*n_leaf, out_dim)

    # ---- segment mean over leaves: precomputed exact 1/count matrix (f32) ----
    o_ref[...] = jnp.dot(avg_ref[...], ans,
                         preferred_element_type=jnp.float32).astype(o_ref.dtype)


# --------------------------------------------------------------------------
# Host-side parameter / static-matrix construction.
# --------------------------------------------------------------------------
def _init_linear(key, d_in, d_out):
    kw, kb = jax.random.split(key)
    w = jax.random.normal(kw, (d_in, d_out), jnp.float32) / jnp.sqrt(jnp.float32(d_in))
    b = 0.01 * jax.random.normal(kb, (1, d_out), jnp.float32)
    return w, b


def build_params(key, in_dim, n_leaf, ancestor_dim, num_parts=3):
    feat_dims = (16, 24, 48)                   # leaf, mid, root feature dims
    num_levels = len(feat_dims)
    assert n_leaf % (2 ** (num_levels - 1)) == 0

    keys = jax.random.split(key, 2 * num_levels)

    # encoder MLPs (leaf-first); weights bf16 (MXU operands), biases f32
    enc = []
    d_in = in_dim
    for l in range(num_levels):
        w, b = _init_linear(keys[l], d_in, feat_dims[l])
        enc += [w.astype(jnp.bfloat16), b]
        d_in = feat_dims[l]

    # decoder push_down (root-first); layer 0 is Identity
    rev_fd = feat_dims[::-1]                               # (48, 24, 16)
    globe = [max(ancestor_dim, fd) for fd in rev_fd]       # e.g. [48, 32, 32]
    assert globe[0] == rev_fd[0]
    dec = []
    for i in range(1, num_levels):
        d_feat, d_scat, d_out = rev_fd[i], globe[i - 1], globe[i]
        w, b = _init_linear(keys[num_levels + i], d_feat + d_scat, d_out)
        wf, ws = w[:d_feat], w[d_feat:]                    # cat order: [features, scattered]
        dec += [wf.astype(jnp.bfloat16), ws.astype(jnp.bfloat16), b]

    arrange = [min(num_parts - 1, (i * num_parts) // n_leaf) for i in range(n_leaf)]
    arrange = jnp.asarray(arrange, jnp.int32)

    return dict(
        arrange=arrange,
        flat_weights=enc + dec,
        num_levels=num_levels,
        num_segments=num_parts,
        n_leaf=n_leaf,
        out_dim=globe[-1],
    )


def _build_static_mats(bm, n_leaf, num_levels, arrange, num_segments):
    """Block-diagonal (over the batch block) selection / averaging matrices."""

    def pair_pool(n_child):                    # (n_child//2, n_child), mean of pairs
        r = jnp.arange(n_child // 2)[:, None]
        c = jnp.arange(n_child)[None, :]
        sel = jnp.logical_or(c == 2 * r, c == 2 * r + 1)
        return sel.astype(jnp.float32) * 0.5

    eye = jnp.eye(bm, dtype=jnp.float32)

    pools = []
    n = n_leaf
    for _ in range(1, num_levels):             # encoder level l-1 -> l
        pools.append(jnp.kron(eye, pair_pool(n)).astype(jnp.bfloat16))
        n //= 2

    expands = []
    for i in range(1, num_levels):             # decoder step i: level L-i -> L-1-i
        n_child = n_leaf >> (num_levels - 1 - i)
        dup = pair_pool(n_child).T * 2.0       # (n_child, n_child//2) duplication
        expands.append(jnp.kron(eye, dup).astype(jnp.bfloat16))

    onehot = (jnp.arange(num_segments)[:, None] == arrange[None, :]).astype(jnp.float32)
    counts = onehot.sum(axis=1, keepdims=True)
    # TODO(synk): empty segments would be 0/0 = NaN in the PyTorch reference;
    #             here they produce 0 (no empty segments for this arrange).
    avg = jnp.kron(eye, onehot / jnp.maximum(counts, 1.0))   # f32, exact 1/count
    return pools, expands, avg


# --------------------------------------------------------------------------
# Forward: single fused pallas_call, BM batch elements per (parallel) grid step.
# --------------------------------------------------------------------------
def segment_forward(params, x, bm_target=32):
    B, n_leaf, in_dim = x.shape
    assert n_leaf == params["n_leaf"]
    num_levels = params["num_levels"]
    num_segments = params["num_segments"]
    out_dim = params["out_dim"]
    flat = params["flat_weights"]

    # Batch block: multiple of 8 (sublane-aligned output block), capped at
    # bm_target, and <= B//2 when possible so v7x's two TensorCores both work.
    bm = max(1, min(bm_target, B // 2))
    bm = ((bm + 7) // 8) * 8
    n_blocks = pl.cdiv(B, bm)
    b_pad = n_blocks * bm

    xp = x if b_pad == B else jnp.pad(x, ((0, b_pad - B), (0, 0), (0, 0)))
    x2 = xp.reshape(b_pad * n_leaf, in_dim)            # stacked rows for the MXU

    pools, expands, avg = _build_static_mats(
        bm, n_leaf, num_levels, params["arrange"], num_segments)
    static_mats = pools + expands + [avg]

    kernel = functools.partial(_fused_segment_kernel, num_levels=num_levels)

    in_specs = (
        [pl.BlockSpec((bm * n_leaf, in_dim), lambda i: (i, 0))]          # x block
        + [pl.BlockSpec(m.shape, lambda i: (0, 0)) for m in static_mats]  # grid-invariant
        + [pl.BlockSpec(w.shape, lambda i: (0, 0)) for w in flat]         # grid-invariant
    )
    out = pl.pallas_call(
        kernel,
        out_shape=jax.ShapeDtypeStruct((b_pad * num_segments, out_dim), jnp.float32),
        grid=(n_blocks,),
        in_specs=in_specs,
        out_specs=pl.BlockSpec((bm * num_segments, out_dim), lambda i: (i, 0)),
        compiler_params=pltpu.CompilerParams(dimension_semantics=("parallel",)),
    )(x2, *static_mats, *flat)

    return out.reshape(b_pad, num_segments, out_dim)[:B]


# --------------------------------------------------------------------------
if __name__ == "__main__":
    key = jax.random.PRNGKey(0)
    k_par, k_x = jax.random.split(key)

    B, n_leaf, in_dim, ancestor_dim = 2, 8, 6, 32

    params = build_params(k_par, in_dim, n_leaf, ancestor_dim)
    x = jax.random.normal(k_x, (B, n_leaf, in_dim), jnp.float32)

    out = segment_forward(params, x)
    out = jax.block_until_ready(out)

    assert out.shape == (B, params["num_segments"], ancestor_dim), out.shape
    assert bool(jnp.all(jnp.isfinite(out)))
    print("KERNEL_OK")
</pallas_src>

<mosaic_0001>
module attributes {stable_mosaic.version = 11 : i64} {
  func.func @_fused_segment_kernel(%arg0: i32, %arg1: memref<64x6xf32, #tpu.memory_space<vmem>>, %arg2: memref<32x64xbf16, #tpu.memory_space<vmem>>, %arg3: memref<16x32xbf16, #tpu.memory_space<vmem>>, %arg4: memref<32x16xbf16, #tpu.memory_space<vmem>>, %arg5: memref<64x32xbf16, #tpu.memory_space<vmem>>, %arg6: memref<24x64xf32, #tpu.memory_space<vmem>>, %arg7: memref<6x16xbf16, #tpu.memory_space<vmem>>, %arg8: memref<1x16xf32, #tpu.memory_space<vmem>>, %arg9: memref<16x24xbf16, #tpu.memory_space<vmem>>, %arg10: memref<1x24xf32, #tpu.memory_space<vmem>>, %arg11: memref<24x48xbf16, #tpu.memory_space<vmem>>, %arg12: memref<1x48xf32, #tpu.memory_space<vmem>>, %arg13: memref<24x32xbf16, #tpu.memory_space<vmem>>, %arg14: memref<48x32xbf16, #tpu.memory_space<vmem>>, %arg15: memref<1x32xf32, #tpu.memory_space<vmem>>, %arg16: memref<16x32xbf16, #tpu.memory_space<vmem>>, %arg17: memref<32x32xbf16, #tpu.memory_space<vmem>>, %arg18: memref<1x32xf32, #tpu.memory_space<vmem>>, %arg19: memref<24x32xf32, #tpu.memory_space<vmem>>) attributes {dimension_semantics = [#tpu.dimension_semantics<parallel>], iteration_bounds = array<i64: 1>, scalar_prefetch = 0 : i64, scratch_operands = 0 : i64, tpu.core_type = #tpu.core_type<tc>, window_params = [{transform_indices = @transform_0, window_bounds = array<i64: 64, 6>}, {pipeline_mode = #tpu.pipeline_mode<synchronous>, transform_indices = @transform_1, window_bounds = array<i64: 32, 64>}, {pipeline_mode = #tpu.pipeline_mode<synchronous>, transform_indices = @transform_2, window_bounds = array<i64: 16, 32>}, {pipeline_mode = #tpu.pipeline_mode<synchronous>, transform_indices = @transform_3, window_bounds = array<i64: 32, 16>}, {pipeline_mode = #tpu.pipeline_mode<synchronous>, transform_indices = @transform_4, window_bounds = array<i64: 64, 32>}, {pipeline_mode = #tpu.pipeline_mode<synchronous>, transform_indices = @transform_5, window_bounds = array<i64: 24, 64>}, {pipeline_mode = #tpu.pipeline_mode<synchronous>, transform_indices = @transform_6, window_bounds = array<i64: 6, 16>}, {pipeline_mode = #tpu.pipeline_mode<synchronous>, transform_indices = @transform_7, window_bounds = array<i64: 1, 16>}, {pipeline_mode = #tpu.pipeline_mode<synchronous>, transform_indices = @transform_8, window_bounds = array<i64: 16, 24>}, {pipeline_mode = #tpu.pipeline_mode<synchronous>, transform_indices = @transform_9, window_bounds = array<i64: 1, 24>}, {pipeline_mode = #tpu.pipeline_mode<synchronous>, transform_indices = @transform_10, window_bounds = array<i64: 24, 48>}, {pipeline_mode = #tpu.pipeline_mode<synchronous>, transform_indices = @transform_11, window_bounds = array<i64: 1, 48>}, {pipeline_mode = #tpu.pipeline_mode<synchronous>, transform_indices = @transform_12, window_bounds = array<i64: 24, 32>}, {pipeline_mode = #tpu.pipeline_mode<synchronous>, transform_indices = @transform_13, window_bounds = array<i64: 48, 32>}, {pipeline_mode = #tpu.pipeline_mode<synchronous>, transform_indices = @transform_14, window_bounds = array<i64: 1, 32>}, {pipeline_mode = #tpu.pipeline_mode<synchronous>, transform_indices = @transform_15, window_bounds = array<i64: 16, 32>}, {pipeline_mode = #tpu.pipeline_mode<synchronous>, transform_indices = @transform_16, window_bounds = array<i64: 32, 32>}, {pipeline_mode = #tpu.pipeline_mode<synchronous>, transform_indices = @transform_17, window_bounds = array<i64: 1, 32>}, {transform_indices = @transform_18, window_bounds = array<i64: 24, 32>}]} {
    %c0 = arith.constant 0 : index
    %c0_0 = arith.constant 0 : index
    %0 = vector.load %arg1[%c0, %c0_0] : memref<64x6xf32, #tpu.memory_space<vmem>>, vector<64x6xf32>
    %c0_1 = arith.constant 0 : index
    %c0_2 = arith.constant 0 : index
    %1 = vector.load %arg7[%c0_1, %c0_2] : memref<6x16xbf16, #tpu.memory_space<vmem>>, vector<6x16xbf16>
    %2 = arith.truncf %0 : vector<64x6xf32> to vector<64x6xbf16>
    %cst = arith.constant dense<0.000000e+00> : vector<64x16xf32>
    %3 = tpu.matmul %2, %1, %cst {dimension_numbers = #tpu.dot_dimension_numbers<[1], [0], [0], [1], [0, 0, 1, 1], [], []>} : vector<64x6xbf16>, vector<6x16xbf16>, vector<64x16xf32> -> vector<64x16xf32>
    %c0_3 = arith.constant 0 : index
    %c0_4 = arith.constant 0 : index
    %4 = vector.load %arg8[%c0_3, %c0_4] : memref<1x16xf32, #tpu.memory_space<vmem>>, vector<1x16xf32>
    %5 = vector.broadcast %4 : vector<1x16xf32> to vector<64x16xf32>
    %6 = arith.addf %3, %5 : vector<64x16xf32>
    %cst_5 = arith.constant 0.000000e+00 : f32
    %7 = vector.broadcast %cst_5 : f32 to vector<64x16xf32>
    %8 = arith.maximumf %6, %7 : vector<64x16xf32>
    %c0_6 = arith.constant 0 : index
    %c0_7 = arith.constant 0 : index
    %9 = vector.load %arg2[%c0_6, %c0_7] : memref<32x64xbf16, #tpu.memory_space<vmem>>, vector<32x64xbf16>
    %10 = arith.truncf %8 : vector<64x16xf32> to vector<64x16xbf16>
    %cst_8 = arith.constant dense<0.000000e+00> : vector<32x16xf32>
    %11 = tpu.matmul %9, %10, %cst_8 {dimension_numbers = #tpu.dot_dimension_numbers<[1], [0], [0], [1], [0, 0, 1, 1], [], []>} : vector<32x64xbf16>, vector<64x16xbf16>, vector<32x16xf32> -> vector<32x16xf32>
    %c0_9 = arith.constant 0 : index
    %c0_10 = arith.constant 0 : index
    %12 = vector.load %arg9[%c0_9, %c0_10] : memref<16x24xbf16, #tpu.memory_space<vmem>>, vector<16x24xbf16>
    %13 = arith.truncf %11 : vector<32x16xf32> to vector<32x16xbf16>
    %cst_11 = arith.constant dense<0.000000e+00> : vector<32x24xf32>
    %14 = tpu.matmul %13, %12, %cst_11 {dimension_numbers = #tpu.dot_dimension_numbers<[1], [0], [0], [1], [0, 0, 1, 1], [], []>} : vector<32x16xbf16>, vector<16x24xbf16>, vector<32x24xf32> -> vector<32x24xf32>
    %c0_12 = arith.constant 0 : index
    %c0_13 = arith.constant 0 : index
    %15 = vector.load %arg10[%c0_12, %c0_13] : memref<1x24xf32, #tpu.memory_space<vmem>>, vector<1x24xf32>
    %16 = vector.broadcast %15 : vector<1x24xf32> to vector<32x24xf32>
    %17 = arith.addf %14, %16 : vector<32x24xf32>
    %cst_14 = arith.constant 0.000000e+00 : f32
    %18 = vector.broadcast %cst_14 : f32 to vector<32x24xf32>
    %19 = arith.maximumf %17, %18 : vector<32x24xf32>
    %c0_15 = arith.constant 0 : index
    %c0_16 = arith.constant 0 : index
    %20 = vector.load %arg3[%c0_15, %c0_16] : memref<16x32xbf16, #tpu.memory_space<vmem>>, vector<16x32xbf16>
    %21 = arith.truncf %19 : vector<32x24xf32> to vector<32x24xbf16>
    %cst_17 = arith.constant dense<0.000000e+00> : vector<16x24xf32>
    %22 = tpu.matmul %20, %21, %cst_17 {dimension_numbers = #tpu.dot_dimension_numbers<[1], [0], [0], [1], [0, 0, 1, 1], [], []>} : vector<16x32xbf16>, vector<32x24xbf16>, vector<16x24xf32> -> vector<16x24xf32>
    %c0_18 = arith.constant 0 : index
    %c0_19 = arith.constant 0 : index
    %23 = vector.load %arg11[%c0_18, %c0_19] : memref<24x48xbf16, #tpu.memory_space<vmem>>, vector<24x48xbf16>
    %24 = arith.truncf %22 : vector<16x24xf32> to vector<16x24xbf16>
    %cst_20 = arith.constant dense<0.000000e+00> : vector<16x48xf32>
    %25 = tpu.matmul %24, %23, %cst_20 {dimension_numbers = #tpu.dot_dimension_numbers<[1], [0], [0], [1], [0, 0, 1, 1], [], []>} : vector<16x24xbf16>, vector<24x48xbf16>, vector<16x48xf32> -> vector<16x48xf32>
    %c0_21 = arith.constant 0 : index
    %c0_22 = arith.constant 0 : index
    %26 = vector.load %arg12[%c0_21, %c0_22] : memref<1x48xf32, #tpu.memory_space<vmem>>, vector<1x48xf32>
    %27 = vector.broadcast %26 : vector<1x48xf32> to vector<16x48xf32>
    %28 = arith.addf %25, %27 : vector<16x48xf32>
    %cst_23 = arith.constant 0.000000e+00 : f32
    %29 = vector.broadcast %cst_23 : f32 to vector<16x48xf32>
    %30 = arith.maximumf %28, %29 : vector<16x48xf32>
    %c0_24 = arith.constant 0 : index
    %c0_25 = arith.constant 0 : index
    %31 = vector.load %arg14[%c0_24, %c0_25] : memref<48x32xbf16, #tpu.memory_space<vmem>>, vector<48x32xbf16>
    %32 = arith.truncf %30 : vector<16x48xf32> to vector<16x48xbf16>
    %cst_26 = arith.constant dense<0.000000e+00> : vector<16x32xf32>
    %33 = tpu.matmul %32, %31, %cst_26 {dimension_numbers = #tpu.dot_dimension_numbers<[1], [0], [0], [1], [0, 0, 1, 1], [], []>} : vector<16x48xbf16>, vector<48x32xbf16>, vector<16x32xf32> -> vector<16x32xf32>
    %c0_27 = arith.constant 0 : index
    %c0_28 = arith.constant 0 : index
    %34 = vector.load %arg4[%c0_27, %c0_28] : memref<32x16xbf16, #tpu.memory_space<vmem>>, vector<32x16xbf16>
    %35 = arith.truncf %33 : vector<16x32xf32> to vector<16x32xbf16>
    %cst_29 = arith.constant dense<0.000000e+00> : vector<32x32xf32>
    %36 = tpu.matmul %34, %35, %cst_29 {dimension_numbers = #tpu.dot_dimension_numbers<[1], [0], [0], [1], [0, 0, 1, 1], [], []>} : vector<32x16xbf16>, vector<16x32xbf16>, vector<32x32xf32> -> vector<32x32xf32>
    %c0_30 = arith.constant 0 : index
    %c0_31 = arith.constant 0 : index
    %37 = vector.load %arg13[%c0_30, %c0_31] : memref<24x32xbf16, #tpu.memory_space<vmem>>, vector<24x32xbf16>
    %38 = arith.truncf %19 : vector<32x24xf32> to vector<32x24xbf16>
    %cst_32 = arith.constant dense<0.000000e+00> : vector<32x32xf32>
    %39 = tpu.matmul %38, %37, %cst_32 {dimension_numbers = #tpu.dot_dimension_numbers<[1], [0], [0], [1], [0, 0, 1, 1], [], []>} : vector<32x24xbf16>, vector<24x32xbf16>, vector<32x32xf32> -> vector<32x32xf32>
    %40 = arith.addf %39, %36 : vector<32x32xf32>
    %c0_33 = arith.constant 0 : index
    %c0_34 = arith.constant 0 : index
    %41 = vector.load %arg15[%c0_33, %c0_34] : memref<1x32xf32, #tpu.memory_space<vmem>>, vector<1x32xf32>
    %42 = vector.broadcast %41 : vector<1x32xf32> to vector<32x32xf32>
    %43 = arith.addf %40, %42 : vector<32x32xf32>
    %cst_35 = arith.constant 0.000000e+00 : f32
    %44 = vector.broadcast %cst_35 : f32 to vector<32x32xf32>
    %45 = arith.maximumf %43, %44 : vector<32x32xf32>
    %c0_36 = arith.constant 0 : index
    %c0_37 = arith.constant 0 : index
    %46 = vector.load %arg17[%c0_36, %c0_37] : memref<32x32xbf16, #tpu.memory_space<vmem>>, vector<32x32xbf16>
    %47 = arith.truncf %45 : vector<32x32xf32> to vector<32x32xbf16>
    %cst_38 = arith.constant dense<0.000000e+00> : vector<32x32xf32>
    %48 = tpu.matmul %47, %46, %cst_38 {dimension_numbers = #tpu.dot_dimension_numbers<[1], [0], [0], [1], [0, 0, 1, 1], [], []>} : vector<32x32xbf16>, vector<32x32xbf16>, vector<32x32xf32> -> vector<32x32xf32>
    %c0_39 = arith.constant 0 : index
    %c0_40 = arith.constant 0 : index
    %49 = vector.load %arg5[%c0_39, %c0_40] : memref<64x32xbf16, #tpu.memory_space<vmem>>, vector<64x32xbf16>
    %50 = arith.truncf %48 : vector<32x32xf32> to vector<32x32xbf16>
    %cst_41 = arith.constant dense<0.000000e+00> : vector<64x32xf32>
    %51 = tpu.matmul %49, %50, %cst_41 {dimension_numbers = #tpu.dot_dimension_numbers<[1], [0], [0], [1], [0, 0, 1, 1], [], []>} : vector<64x32xbf16>, vector<32x32xbf16>, vector<64x32xf32> -> vector<64x32xf32>
    %c0_42 = arith.constant 0 : index
    %c0_43 = arith.constant 0 : index
    %52 = vector.load %arg16[%c0_42, %c0_43] : memref<16x32xbf16, #tpu.memory_space<vmem>>, vector<16x32xbf16>
    %53 = arith.truncf %8 : vector<64x16xf32> to vector<64x16xbf16>
    %cst_44 = arith.constant dense<0.000000e+00> : vector<64x32xf32>
    %54 = tpu.matmul %53, %52, %cst_44 {dimension_numbers = #tpu.dot_dimension_numbers<[1], [0], [0], [1], [0, 0, 1, 1], [], []>} : vector<64x16xbf16>, vector<16x32xbf16>, vector<64x32xf32> -> vector<64x32xf32>
    %55 = arith.addf %54, %51 : vector<64x32xf32>
    %c0_45 = arith.constant 0 : index
    %c0_46 = arith.constant 0 : index
    %56 = vector.load %arg18[%c0_45, %c0_46] : memref<1x32xf32, #tpu.memory_space<vmem>>, vector<1x32xf32>
    %57 = vector.broadcast %56 : vector<1x32xf32> to vector<64x32xf32>
    %58 = arith.addf %55, %57 : vector<64x32xf32>
    %cst_47 = arith.constant 0.000000e+00 : f32
    %59 = vector.broadcast %cst_47 : f32 to vector<64x32xf32>
    %60 = arith.maximumf %58, %59 : vector<64x32xf32>
    %c0_48 = arith.constant 0 : index
    %c0_49 = arith.constant 0 : index
    %61 = vector.load %arg6[%c0_48, %c0_49] : memref<24x64xf32, #tpu.memory_space<vmem>>, vector<24x64xf32>
    %cst_50 = arith.constant dense<0.000000e+00> : vector<24x32xf32>
    %62 = tpu.matmul %61, %60, %cst_50 {dimension_numbers = #tpu.dot_dimension_numbers<[1], [0], [0], [1], [0, 0, 1, 1], [], []>} : vector<24x64xf32>, vector<64x32xf32>, vector<24x32xf32> -> vector<24x32xf32>
    %c0_51 = arith.constant 0 : index
    %c0_52 = arith.constant 0 : index
    %63 = vector.load %arg19[%c0_51, %c0_52] : memref<24x32xf32, #tpu.memory_space<vmem>>, vector<24x32xf32>
    tpu.vector_store %arg19[%c0_51, %c0_52], %62 {strides = array<i32>} : memref<24x32xf32, #tpu.memory_space<vmem>>, vector<24x32xf32>,
    return
  }
  func.func @transform_0(%arg0: i32) -> (i32, i32) {
    %c0_i32 = arith.constant 0 : i32
    %c0_i32_0 = arith.constant 0 : i32
    return %arg0, %c0_i32 : i32, i32
  }
  func.func @transform_1(%arg0: i32) -> (i32, i32) {
    %c0_i32 = arith.constant 0 : i32
    %c0_i32_0 = arith.constant 0 : i32
    %c0_i32_1 = arith.constant 0 : i32
    return %c0_i32, %c0_i32_0 : i32, i32
  }
  func.func @transform_2(%arg0: i32) -> (i32, i32) {
    %c0_i32 = arith.constant 0 : i32
    %c0_i32_0 = arith.constant 0 : i32
    %c0_i32_1 = arith.constant 0 : i32
    return %c0_i32, %c0_i32_0 : i32, i32
  }
  func.func @transform_3(%arg0: i32) -> (i32, i32) {
    %c0_i32 = arith.constant 0 : i32
    %c0_i32_0 = arith.constant 0 : i32
    %c0_i32_1 = arith.constant 0 : i32
    return %c0_i32, %c0_i32_0 : i32, i32
  }
  func.func @transform_4(%arg0: i32) -> (i32, i32) {
    %c0_i32 = arith.constant 0 : i32
    %c0_i32_0 = arith.constant 0 : i32
    %c0_i32_1 = arith.constant 0 : i32
    return %c0_i32, %c0_i32_0 : i32, i32
  }
  func.func @transform_5(%arg0: i32) -> (i32, i32) {
    %c0_i32 = arith.constant 0 : i32
    %c0_i32_0 = arith.constant 0 : i32
    %c0_i32_1 = arith.constant 0 : i32
    return %c0_i32, %c0_i32_0 : i32, i32
  }
  func.func @transform_6(%arg0: i32) -> (i32, i32) {
    %c0_i32 = arith.constant 0 : i32
    %c0_i32_0 = arith.constant 0 : i32
    %c0_i32_1 = arith.constant 0 : i32
    return %c0_i32, %c0_i32_0 : i32, i32
  }
  func.func @transform_7(%arg0: i32) -> (i32, i32) {
    %c0_i32 = arith.constant 0 : i32
    %c0_i32_0 = arith.constant 0 : i32
    %c0_i32_1 = arith.constant 0 : i32
    return %c0_i32, %c0_i32_0 : i32, i32
  }
  func.func @transform_8(%arg0: i32) -> (i32, i32) {
    %c0_i32 = arith.constant 0 : i32
    %c0_i32_0 = arith.constant 0 : i32
    %c0_i32_1 = arith.constant 0 : i32
    return %c0_i32, %c0_i32_0 : i32, i32
  }
  func.func @transform_9(%arg0: i32) -> (i32, i32) {
    %c0_i32 = arith.constant 0 : i32
    %c0_i32_0 = arith.constant 0 : i32
    %c0_i32_1 = arith.constant 0 : i32
    return %c0_i32, %c0_i32_0 : i32, i32
  }
  func.func @transform_10(%arg0: i32) -> (i32, i32) {
    %c0_i32 = arith.constant 0 : i32
    %c0_i32_0 = arith.constant 0 : i32
    %c0_i32_1 = arith.constant 0 : i32
    return %c0_i32, %c0_i32_0 : i32, i32
  }
  func.func @transform_11(%arg0: i32) -> (i32, i32) {
    %c0_i32 = arith.constant 0 : i32
    %c0_i32_0 = arith.constant 0 : i32
    %c0_i32_1 = arith.constant 0 : i32
    return %c0_i32, %c0_i32_0 : i32, i32
  }
  func.func @transform_12(%arg0: i32) -> (i32, i32) {
    %c0_i32 = arith.constant 0 : i32
    %c0_i32_0 = arith.constant 0 : i32
    %c0_i32_1 = arith.constant 0 : i32
    return %c0_i32, %c0_i32_0 : i32, i32
  }
  func.func @transform_13(%arg0: i32) -> (i32, i32) {
    %c0_i32 = arith.constant 0 : i32
    %c0_i32_0 = arith.constant 0 : i32
    %c0_i32_1 = arith.constant 0 : i32
    return %c0_i32, %c0_i32_0 : i32, i32
  }
  func.func @transform_14(%arg0: i32) -> (i32, i32) {
    %c0_i32 = arith.constant 0 : i32
    %c0_i32_0 = arith.constant 0 : i32
    %c0_i32_1 = arith.constant 0 : i32
    return %c0_i32, %c0_i32_0 : i32, i32
  }
  func.func @transform_15(%arg0: i32) -> (i32, i32) {
    %c0_i32 = arith.constant 0 : i32
    %c0_i32_0 = arith.constant 0 : i32
    %c0_i32_1 = arith.constant 0 : i32
    return %c0_i32, %c0_i32_0 : i32, i32
  }
  func.func @transform_16(%arg0: i32) -> (i32, i32) {
    %c0_i32 = arith.constant 0 : i32
    %c0_i32_0 = arith.constant 0 : i32
    %c0_i32_1 = arith.constant 0 : i32
    return %c0_i32, %c0_i32_0 : i32, i32
  }
  func.func @transform_17(%arg0: i32) -> (i32, i32) {
    %c0_i32 = arith.constant 0 : i32
    %c0_i32_0 = arith.constant 0 : i32
    %c0_i32_1 = arith.constant 0 : i32
    return %c0_i32, %c0_i32_0 : i32, i32
  }
  func.func @transform_18(%arg0: i32) -> (i32, i32) {
    %c0_i32 = arith.constant 0 : i32
    %c0_i32_0 = arith.constant 0 : i32
    return %arg0, %c0_i32 : i32, i32
  }
}

</mosaic_0001>

<llo_original>
// kernel: tpu_custom_call.1
$region0: #{tpu_custom_call.1}
  #allocation0 [shape = 'u32[]', space=smem, size = 0x4, offset = 0x4, fixed_abs, tag = 'smem constant byte address 0x4 - core index']
  #allocation1 [shape = 'u32[72,128]{1,0:T(1,128)}', space=vmem, size = 0x9000, scoped, tag = 'internal scratch']
  %s0 = inlined_call_operand.vmem [shape: f32[64,6], index: 0, kind: input, shape index: {}]
  %s1 = inlined_call_operand.vmem [shape: bf16[32,64], index: 1, kind: input, shape index: {}]
  %s2 = inlined_call_operand.vmem [shape: bf16[16,32], index: 2, kind: input, shape index: {}]
  %s3 = inlined_call_operand.vmem [shape: bf16[32,16], index: 3, kind: input, shape index: {}]
  %s4 = inlined_call_operand.vmem [shape: bf16[64,32], index: 4, kind: input, shape index: {}]
  %s5 = inlined_call_operand.vmem [shape: f32[24,64], index: 5, kind: input, shape index: {}]
  %s6 = inlined_call_operand.vmem [shape: bf16[6,16], index: 6, kind: input, shape index: {}]
  %s7 = inlined_call_operand.vmem [shape: f32[1,16], index: 7, kind: input, shape index: {}]
  %s8 = inlined_call_operand.vmem [shape: bf16[16,24], index: 8, kind: input, shape index: {}]
  %s9 = inlined_call_operand.vmem [shape: f32[1,24], index: 9, kind: input, shape index: {}]
  %s10 = inlined_call_operand.vmem [shape: bf16[24,48], index: 10, kind: input, shape index: {}]
  %s11 = inlined_call_operand.vmem [shape: f32[1,48], index: 11, kind: input, shape index: {}]
  %s12 = inlined_call_operand.vmem [shape: bf16[24,32], index: 12, kind: input, shape index: {}]
  %s13 = inlined_call_operand.vmem [shape: bf16[48,32], index: 13, kind: input, shape index: {}]
  %s14 = inlined_call_operand.vmem [shape: f32[1,32], index: 14, kind: input, shape index: {}]
  %s15 = inlined_call_operand.vmem [shape: bf16[16,32], index: 15, kind: input, shape index: {}]
  %s16 = inlined_call_operand.vmem [shape: bf16[32,32], index: 16, kind: input, shape index: {}]
  %s17 = inlined_call_operand.vmem [shape: f32[1,32], index: 17, kind: input, shape index: {}]
  %s18 = inlined_call_operand.hbm [shape: f32[24,32], index: 18, kind: output, shape index: {}]
  %s19 = sld [smem:[#allocation0]]
  $region82: #{tpu_custom_call.1} parent=0
    _
  %s21 = ssub.s32 1, %s19
  %s22 = scalar_select 0, %s21, %s19
  $region1: #{tpu_custom_call.1} parent=0
    #allocation2 [shape = 'u8[12288]{0}', space=vmem, size = 0x3000, scoped, tag = 'output window, operand 0, single buffered']
    #allocation3 [shape = 's32[1]{0}', space=sflag, size = 0x4, scoped, tag = 'scoped memory for tpu_custom_call.1']
    %23 = vsyncpa [#allocation3], 0
    // Predicated region
    $region2: #{tpu_custom_call.1} parent=1 // pred_check
      _
    $region3: #{tpu_custom_call.1} parent=1 // pred_check_branch
      %25 = sbr.rel (0) target = $region5
    $region4: #{tpu_custom_call.1} parent=1 // pred_region
      _
    $region5: #{tpu_custom_call.1} parent=1 // pred_fallthru
      _
    // Predicated region
    $region6: #{tpu_custom_call.1} parent=1 // pred_check
      _
    $region7: #{tpu_custom_call.1} parent=1 // pred_check_branch
      %27 = sbr.rel (0) target = $region9
    $region8: #{tpu_custom_call.1} parent=1 // pred_region
      _
    $region9: #{tpu_custom_call.1} parent=1 // pred_fallthru
      _
    // Predicated region
    $region10: #{tpu_custom_call.1} parent=1 // pred_check
      _
    $region11: #{tpu_custom_call.1} parent=1 // pred_check_branch
      %29 = sbr.rel (0) target = $region13
    $region12: #{tpu_custom_call.1} parent=1 // pred_region
      _
    $region13: #{tpu_custom_call.1} parent=1 // pred_fallthru
      _
    // Predicated region
    $region14: #{tpu_custom_call.1} parent=1 // pred_check
      _
    $region15: #{tpu_custom_call.1} parent=1 // pred_check_branch
      %31 = sbr.rel (0) target = $region17
    $region16: #{tpu_custom_call.1} parent=1 // pred_region
      _
    $region17: #{tpu_custom_call.1} parent=1 // pred_fallthru
      _
    // Predicated region
    $region18: #{tpu_custom_call.1} parent=1 // pred_check
      _
    $region19: #{tpu_custom_call.1} parent=1 // pred_check_branch
      %33 = sbr.rel (0) target = $region21
    $region20: #{tpu_custom_call.1} parent=1 // pred_region
      _
    $region21: #{tpu_custom_call.1} parent=1 // pred_fallthru
      _
    // Predicated region
    $region22: #{tpu_custom_call.1} parent=1 // pred_check
      _
    $region23: #{tpu_custom_call.1} parent=1 // pred_check_branch
      %35 = sbr.rel (0) target = $region25
    $region24: #{tpu_custom_call.1} parent=1 // pred_region
      _
    $region25: #{tpu_custom_call.1} parent=1 // pred_fallthru
      _
    // Predicated region
    $region26: #{tpu_custom_call.1} parent=1 // pred_check
      _
    $region27: #{tpu_custom_call.1} parent=1 // pred_check_branch
      %37 = sbr.rel (0) target = $region29
    $region28: #{tpu_custom_call.1} parent=1 // pred_region
      _
    $region29: #{tpu_custom_call.1} parent=1 // pred_fallthru
      _
    // Predicated region
    $region30: #{tpu_custom_call.1} parent=1 // pred_check
      _
    $region31: #{tpu_custom_call.1} parent=1 // pred_check_branch
      %39 = sbr.rel (0) target = $region33
    $region32: #{tpu_custom_call.1} parent=1 // pred_region
      _
    $region33: #{tpu_custom_call.1} parent=1 // pred_fallthru
      _
    // Predicated region
    $region34: #{tpu_custom_call.1} parent=1 // pred_check
      _
    $region35: #{tpu_custom_call.1} parent=1 // pred_check_branch
      %41 = sbr.rel (0) target = $region37
    $region36: #{tpu_custom_call.1} parent=1 // pred_region
      _
    $region37: #{tpu_custom_call.1} parent=1 // pred_fallthru
      _
    // Predicated region
    $region38: #{tpu_custom_call.1} parent=1 // pred_check
      _
    $region39: #{tpu_custom_call.1} parent=1 // pred_check_branch
      %43 = sbr.rel (0) target = $region41
    $region40: #{tpu_custom_call.1} parent=1 // pred_region
      _
    $region41: #{tpu_custom_call.1} parent=1 // pred_fallthru
      _
    // Predicated region
    $region42: #{tpu_custom_call.1} parent=1 // pred_check
      _
    $region43: #{tpu_custom_call.1} parent=1 // pred_check_branch
      %45 = sbr.rel (0) target = $region45
    $region44: #{tpu_custom_call.1} parent=1 // pred_region
      _
    $region45: #{tpu_custom_call.1} parent=1 // pred_fallthru
      _
    // Predicated region
    $region46: #{tpu_custom_call.1} parent=1 // pred_check
      _
    $region47: #{tpu_custom_call.1} parent=1 // pred_check_branch
      %47 = sbr.rel (0) target = $region49
    $region48: #{tpu_custom_call.1} parent=1 // pred_region
      _
    $region49: #{tpu_custom_call.1} parent=1 // pred_fallthru
      _
    // Predicated region
    $region50: #{tpu_custom_call.1} parent=1 // pred_check
      _
    $region51: #{tpu_custom_call.1} parent=1 // pred_check_branch
      %49 = sbr.rel (0) target = $region53
    $region52: #{tpu_custom_call.1} parent=1 // pred_region
      _
    $region53: #{tpu_custom_call.1} parent=1 // pred_fallthru
      _
    // Predicated region
    $region54: #{tpu_custom_call.1} parent=1 // pred_check
      _
    $region55: #{tpu_custom_call.1} parent=1 // pred_check_branch
      %51 = sbr.rel (0) target = $region57
    $region56: #{tpu_custom_call.1} parent=1 // pred_region
      _
    $region57: #{tpu_custom_call.1} parent=1 // pred_fallthru
      _
    // Predicated region
    $region58: #{tpu_custom_call.1} parent=1 // pred_check
      _
    $region59: #{tpu_custom_call.1} parent=1 // pred_check_branch
      %53 = sbr.rel (0) target = $region61
    $region60: #{tpu_custom_call.1} parent=1 // pred_region
      _
    $region61: #{tpu_custom_call.1} parent=1 // pred_fallthru
      _
    // Predicated region
    $region62: #{tpu_custom_call.1} parent=1 // pred_check
      _
    $region63: #{tpu_custom_call.1} parent=1 // pred_check_branch
      %55 = sbr.rel (0) target = $region65
    $region64: #{tpu_custom_call.1} parent=1 // pred_region
      _
    $region65: #{tpu_custom_call.1} parent=1 // pred_fallthru
      _
    // Predicated region
    $region66: #{tpu_custom_call.1} parent=1 // pred_check
      _
    $region67: #{tpu_custom_call.1} parent=1 // pred_check_branch
      %57 = sbr.rel (0) target = $region69
    $region68: #{tpu_custom_call.1} parent=1 // pred_region
      _
    $region69: #{tpu_custom_call.1} parent=1 // pred_fallthru
      _
    // Predicated region
    $region70: #{tpu_custom_call.1} parent=1 // pred_check
      _
    $region71: #{tpu_custom_call.1} parent=1 // pred_check_branch
      %59 = sbr.rel (0) target = $region73
    $region72: #{tpu_custom_call.1} parent=1 // pred_region
      _
    $region73: #{tpu_custom_call.1} parent=1 // pred_fallthru
      _
    %v61 = vld [vmem:[%s0] sm:$0xff]
    %v62 = vld [vmem:[%s0 + $0x8] sm:$0xff]
    %v63 = vld [vmem:[%s0 + $0x10] sm:$0xff]
    %v64 = vld [vmem:[%s0 + $0x18] sm:$0xff]
    %v65 = vld [vmem:[%s0 + $0x20] sm:$0xff]
    %v66 = vld [vmem:[%s0 + $0x28] sm:$0xff]
    %v67 = vld [vmem:[%s0 + $0x30] sm:$0xff]
    %v68 = vld [vmem:[%s0 + $0x38] sm:$0xff]
    %v69 = vld [vmem:[%s6] sm:$0x7]
    %v70 = vpack.c.bf16 %v62, %v61
    %v71 = vpack.c.bf16 %v64, %v63
    %v72 = vpack.c.bf16 %v66, %v65
    %v73 = vpack.c.bf16 %v68, %v67
    %v74 = vld [vmem:[%s7] sm:$0x1]
    %v76 = vperm.slane %v74, 0
    %vm78 = vcmask 48128
    %v80 = vsel %vm78, %v70, 0
    %v83 = vsel %vm78, %v71, 0
    %v86 = vsel %vm78, %v72, 0
    %v89 = vsel %vm78, %v73, 0
    %vm91 = vcmask 1042432
    %v93 = vsel %vm91, %v69, 0
    %95 = vmatpush.bf16.msra.mxu0 0
    %96 = vmatpush.bf16.msra.mxu0 0
    %97 = vmatpush.bf16.msra.mxu0 0
    %98 = vmatpush.bf16.msra.mxu0 0
    %99 = vmatpush.bf16.msra.mxu0 0
    %100 = vmatpush.bf16.msra.mxu0 0
    %101 = vmatpush.bf16.msra.mxu0 0
    %102 = vmatpush.bf16.msra.mxu0 %v93
    %103 = vmatmul.bf16.gmra.mxu0 %v80
    %v104 = vpop.f32.mrf.mxu0
    %v105 = vadd.f32 %v76, %v104
    %v106 = vpop.f32.mrf.mxu0
    %v107 = vadd.f32 %v76, %v106
    %108 = vmatmul.bf16.gmra.mxu0 %v83
    %v109 = vpop.f32.mrf.mxu0
    %v110 = vadd.f32 %v76, %v109
    %v111 = vpop.f32.mrf.mxu0
    %v112 = vadd.f32 %v76, %v111
    %113 = vmatmul.bf16.gmra.mxu0 %v86
    %v114 = vpop.f32.mrf.mxu0
    %v115 = vadd.f32 %v76, %v114
    %v116 = vpop.f32.mrf.mxu0
    %v117 = vadd.f32 %v76, %v116
    %118 = vmatmul.bf16.gmra.mxu0 %v89
    %v119 = vpop.f32.mrf.mxu0
    %v120 = vadd.f32 %v76, %v119
    %v121 = vpop.f32.mrf.mxu0
    %v122 = vadd.f32 %v76, %v121
    %123 = vdwg.mxu0
    %v124 = vmax.f32 %v105, 0.0
    %v125 = vmax.f32 %v107, 0.0
    %v126 = vmax.f32 %v110, 0.0
    %v127 = vmax.f32 %v112, 0.0
    %v128 = vmax.f32 %v115, 0.0
    %v129 = vmax.f32 %v117, 0.0
    %v130 = vmax.f32 %v120, 0.0
    %v131 = vmax.f32 %v122, 0.0
    %v132 = vld [vmem:[%s1] sm:$0xf]
    %v133 = vld [vmem:[%s1 + $0x4] sm:$0xf]
    %v134 = vld [vmem:[%s1 + $0x8] sm:$0xf]
    %v135 = vld [vmem:[%s1 + $0xc] sm:$0xf]
    %v136 = vpack.c.bf16 %v125, %v124
    %v137 = vpack.c.bf16 %v127, %v126
    %v138 = vpack.c.bf16 %v129, %v128
    %v139 = vpack.c.bf16 %v131, %v130
    %v144 = vunpack.c.l.b16 %v132
    %v145 = vunpack.c.l.b16 %v133
    %v146 = vunpack.c.l.b16 %v134
    %v147 = vunpack.c.l.b16 %v135
    %v148 = vpack.c.b16 %v145, %v144
    %v149 = vpack.c.b16 %v147, %v146
    %vm150 = vcmask 523264
    %v152 = vsel %vm150, %v148, 0
    %v155 = vsel %vm150, %v149, 0
    %157 = vmatpush.bf16.msra.mxu0 0
    %158 = vmatpush.bf16.msra.mxu0 0
    %159 = vmatpush.bf16.msra.mxu0 0
    %160 = vmatpush.bf16.msra.mxu0 0
    %161 = vmatpush.bf16.msra.mxu0 %v139
    %162 = vmatpush.bf16.msra.mxu0 %v138
    %163 = vmatpush.bf16.msra.mxu0 %v137
    %164 = vmatpush.bf16.msra.mxu0 %v136
    %165 = vmatmul.bf16.gmra.mxu0 %v152
    %v166 = vpop.f32.mrf.mxu0
    %v167 = vadd.f32 0.0, %v166
    %v168 = vpop.f32.mrf.mxu0
    %v169 = vadd.f32 0.0, %v168
    %170 = vmatmul.bf16.gmra.mxu0 %v155
    %v171 = vpop.f32.mrf.mxu0
    %v172 = vadd.f32 0.0, %v171
    %v173 = vpop.f32.mrf.mxu0
    %v174 = vadd.f32 0.0, %v173
    %175 = vdwg.mxu0
    %v176 = vld [vmem:[%s8] sm:$0xf]
    %v177 = vld [vmem:[%s8 + $0x4] sm:$0xf]
    %v178 = vpack.c.bf16 %v169, %v167
    %v179 = vpack.c.bf16 %v174, %v172
    %v180 = vld [vmem:[%s9] sm:$0x1]
    %v182 = vperm.slane %v180, 0
    %v186 = vunpack.c.l.b16 %v176
    %v187 = vunpack.c.l.b16 %v177
    %v188 = vpack.c.b16 %v187, %v186
    %vm190 = vcmask 130048
    %v192 = vsel %vm190, %v178, 0
    %v195 = vsel %vm190, %v179, 0
    %197 = vmatpush.bf16.msra.mxu0 0
    %198 = vmatpush.bf16.msra.mxu0 0
    %199 = vmatpush.bf16.msra.mxu0 0
    %200 = vmatpush.bf16.msra.mxu0 0
    %201 = vmatpush.bf16.msra.mxu0 0
    %202 = vmatpush.bf16.msra.mxu0 0
    %203 = vmatpush.bf16.msra.mxu0 0
    %204 = vmatpush.bf16.msra.mxu0 %v188
    %205 = vmatmul.bf16.gmra.mxu0 %v192
    %v206 = vpop.f32.mrf.mxu0
    %v207 = vadd.f32 %v182, %v206
    %v208 = vpop.f32.mrf.mxu0
    %v209 = vadd.f32 %v182, %v208
    %210 = vmatmul.bf16.gmra.mxu0 %v195
    %v211 = vpop.f32.mrf.mxu0
    %v212 = vadd.f32 %v182, %v211
    %v213 = vpop.f32.mrf.mxu0
    %v214 = vadd.f32 %v182, %v213
    %215 = vdwg.mxu0
    %v216 = vmax.f32 %v207, 0.0
    %v217 = vmax.f32 %v209, 0.0
    %v218 = vmax.f32 %v212, 0.0
    %v219 = vmax.f32 %v214, 0.0
    %v220 = vld [vmem:[%s2] sm:$0xf]
    %v221 = vld [vmem:[%s2 + $0x4] sm:$0xf]
    %v222 = vpack.c.bf16 %v217, %v216
    %v223 = vpack.c.bf16 %v219, %v218
    %v226 = vunpack.c.l.b16 %v220
    %v227 = vunpack.c.l.b16 %v221
    %v228 = vpack.c.b16 %v227, %v226
    %vm229 = vcmask 261120
    %v231 = vsel %vm229, %v228, 0
    %233 = vmatpush.bf16.msra.mxu0 0
    %234 = vmatpush.bf16.msra.mxu0 0
    %235 = vmatpush.bf16.msra.mxu0 0
    %236 = vmatpush.bf16.msra.mxu0 0
    %237 = vmatpush.bf16.msra.mxu0 0
    %238 = vmatpush.bf16.msra.mxu0 0
    %239 = vmatpush.bf16.msra.mxu0 %v223
    %240 = vmatpush.bf16.msra.mxu0 %v222
    %241 = vmatmul.bf16.gmra.mxu0 %v231
    %v242 = vpop.f32.mrf.mxu0
    %v243 = vadd.f32 0.0, %v242
    %v244 = vpop.f32.mrf.mxu0
    %v245 = vadd.f32 0.0, %v244
    %246 = vdwg.mxu0
    %v247 = vld [vmem:[%s10] sm:$0xf]
    %v248 = vld [vmem:[%s10 + $0x4] sm:$0xf]
    %v249 = vld [vmem:[%s10 + $0x8] sm:$0xf]
    %v250 = vpack.c.bf16 %v245, %v243
    %v251 = vld [vmem:[%s11] sm:$0x1]
    %v253 = vperm.slane %v251, 0
    %v258 = vunpack.c.l.b16 %v247
    %v259 = vunpack.c.l.b16 %v248
    %v260 = vunpack.c.l.b16 %v249
    %v261 = vpack.c.b16 %v259, %v258
    %v262 = vpack.c.b16 %v260, %v260
    %vm264 = vcmask 195584
    %v266 = vsel %vm264, %v250, 0
    %vm268 = vcmask 1043456
    %v270 = vsel %vm268, %v262, 0
    %272 = vmatpush.bf16.msra.mxu0 0
    %273 = vmatpush.bf16.msra.mxu0 0
    %274 = vmatpush.bf16.msra.mxu0 0
    %275 = vmatpush.bf16.msra.mxu0 0
    %276 = vmatpush.bf16.msra.mxu0 0
    %277 = vmatpush.bf16.msra.mxu0 0
    %278 = vmatpush.bf16.msra.mxu0 %v270
    %279 = vmatpush.bf16.msra.mxu0 %v261
    %280 = vmatmul.bf16.gmra.mxu0 %v266
    %v281 = vpop.f32.mrf.mxu0
    %v282 = vadd.f32 %v253, %v281
    %v283 = vpop.f32.mrf.mxu0
    %v284 = vadd.f32 %v253, %v283
    %285 = vdwg.mxu0
    %v286 = vmax.f32 %v282, 0.0
    %v287 = vmax.f32 %v284, 0.0
    %v288 = vld [vmem:[%s13] sm:$0xf]
    %v289 = vld [vmem:[%s13 + $0x4] sm:$0xf]
    %v290 = vld [vmem:[%s13 + $0x8] sm:$0xf]
    %v291 = vld [vmem:[%s13 + $0xc] sm:$0xf]
    %v292 = vld [vmem:[%s13 + $0x10] sm:$0xf]
    %v293 = vld [vmem:[%s13 + $0x14] sm:$0xf]
    %v294 = vpack.c.bf16 %v287, %v286
    %v301 = vunpack.c.l.b16 %v288
    %v302 = vunpack.c.l.b16 %v289
    %v303 = vunpack.c.l.b16 %v290
    %v304 = vunpack.c.l.b16 %v291
    %v305 = vunpack.c.l.b16 %v292
    %v306 = vunpack.c.l.b16 %v293
    %v307 = vpack.c.b16 %v302, %v301
    %v308 = vpack.c.b16 %v304, %v303
    %v309 = vpack.c.b16 %v306, %v305
    %vm313 = vcmask 392192
    %v315 = vsel %vm313, %v294, 0
    %317 = vmatpush.bf16.msra.mxu0 0
    %318 = vmatpush.bf16.msra.mxu0 0
    %319 = vmatpush.bf16.msra.mxu0 0
    %320 = vmatpush.bf16.msra.mxu0 0
    %321 = vmatpush.bf16.msra.mxu0 0
    %322 = vmatpush.bf16.msra.mxu0 %v309
    %323 = vmatpush.bf16.msra.mxu0 %v308
    %324 = vmatpush.bf16.msra.mxu0 %v307
    %325 = vmatmul.bf16.gmra.mxu0 %v315
    %v326 = vpop.f32.mrf.mxu0
    %v327 = vadd.f32 0.0, %v326
    %v328 = vpop.f32.mrf.mxu0
    %v329 = vadd.f32 0.0, %v328
    %330 = vdwg.mxu0
    %v331 = vld [vmem:[%s3] sm:$0xf]
    %v332 = vld [vmem:[%s3 + $0x4] sm:$0xf]
    %v333 = vld [vmem:[%s3 + $0x8] sm:$0xf]
    %v334 = vld [vmem:[%s3 + $0xc] sm:$0xf]
    %v335 = vpack.c.bf16 %v329, %v327
    %v340 = vunpack.c.l.b16 %v331
    %v341 = vunpack.c.l.b16 %v332
    %v342 = vunpack.c.l.b16 %v333
    %v343 = vunpack.c.l.b16 %v334
    %v344 = vpack.c.b16 %v341, %v340
    %v345 = vpack.c.b16 %v343, %v342
    %v347 = vsel %vm190, %v344, 0
    %v350 = vsel %vm190, %v345, 0
    %352 = vmatpush.bf16.msra.mxu0 0
    %353 = vmatpush.bf16.msra.mxu0 0
    %354 = vmatpush.bf16.msra.mxu0 0
    %355 = vmatpush.bf16.msra.mxu0 0
    %356 = vmatpush.bf16.msra.mxu0 0
    %357 = vmatpush.bf16.msra.mxu0 0
    %358 = vmatpush.bf16.msra.mxu0 0
    %359 = vmatpush.bf16.msra.mxu0 %v335
    %360 = vmatmul.bf16.gmra.mxu0 %v347
    %v361 = vpop.f32.mrf.mxu0
    %v362 = vadd.f32 0.0, %v361
    %v363 = vpop.f32.mrf.mxu0
    %v364 = vadd.f32 0.0, %v363
    %365 = vmatmul.bf16.gmra.mxu0 %v350
    %v366 = vpop.f32.mrf.mxu0
    %v367 = vadd.f32 0.0, %v366
    %v368 = vpop.f32.mrf.mxu0
    %v369 = vadd.f32 0.0, %v368
    %370 = vdwg.mxu0
    %v371 = vld [vmem:[%s12] sm:$0xf]
    %v372 = vld [vmem:[%s12 + $0x4] sm:$0xf]
    %v373 = vld [vmem:[%s12 + $0x8] sm:$0xf]
    %v377 = vunpack.c.l.b16 %v371
    %v378 = vunpack.c.l.b16 %v372
    %v379 = vunpack.c.l.b16 %v373
    %v380 = vpack.c.b16 %v378, %v377
    %v381 = vpack.c.b16 %v379, %v379
    %v384 = vsel %vm264, %v222, 0
    %v387 = vsel %vm264, %v223, 0
    %v390 = vsel %vm268, %v381, 0
    %392 = vmatpush.bf16.msra.mxu0 0
    %393 = vmatpush.bf16.msra.mxu0 0
    %394 = vmatpush.bf16.msra.mxu0 0
    %395 = vmatpush.bf16.msra.mxu0 0
    %396 = vmatpush.bf16.msra.mxu0 0
    %397 = vmatpush.bf16.msra.mxu0 0
    %398 = vmatpush.bf16.msra.mxu0 %v390
    %399 = vmatpush.bf16.msra.mxu0 %v380
    %400 = vmatmul.bf16.gmra.mxu0 %v384
    %v401 = vpop.f32.mrf.mxu0
    %v402 = vadd.f32 %v362, %v401
    %v403 = vpop.f32.mrf.mxu0
    %v404 = vadd.f32 %v364, %v403
    %405 = vmatmul.bf16.gmra.mxu0 %v387
    %v406 = vpop.f32.mrf.mxu0
    %v407 = vadd.f32 %v367, %v406
    %v408 = vpop.f32.mrf.mxu0
    %v409 = vadd.f32 %v369, %v408
    %410 = vdwg.mxu0
    %v411 = vld [vmem:[%s14] sm:$0x1]
    %v413 = vperm.slane %v411, 0
    %v415 = vadd.f32 %v402, %v413
    %v416 = vadd.f32 %v404, %v413
    %v417 = vadd.f32 %v407, %v413
    %v418 = vadd.f32 %v409, %v413
    %v419 = vmax.f32 %v415, 0.0
    %v420 = vmax.f32 %v416, 0.0
    %v421 = vmax.f32 %v417, 0.0
    %v422 = vmax.f32 %v418, 0.0
    %v423 = vld [vmem:[%s16] sm:$0xf]
    %v424 = vld [vmem:[%s16 + $0x4] sm:$0xf]
    %v425 = vld [vmem:[%s16 + $0x8] sm:$0xf]
    %v426 = vld [vmem:[%s16 + $0xc] sm:$0xf]
    %v427 = vpack.c.bf16 %v420, %v419
    %v428 = vpack.c.bf16 %v422, %v421
    %v433 = vunpack.c.l.b16 %v423
    %v434 = vunpack.c.l.b16 %v424
    %v435 = vunpack.c.l.b16 %v425
    %v436 = vunpack.c.l.b16 %v426
    %v437 = vpack.c.b16 %v434, %v433
    %v438 = vpack.c.b16 %v436, %v435
    %v442 = vsel %vm229, %v427, 0
    %v445 = vsel %vm229, %v428, 0
    %447 = vmatpush.bf16.msra.mxu0 0
    %448 = vmatpush.bf16.msra.mxu0 0
    %449 = vmatpush.bf16.msra.mxu0 0
    %450 = vmatpush.bf16.msra.mxu0 0
    %451 = vmatpush.bf16.msra.mxu0 0
    %452 = vmatpush.bf16.msra.mxu0 0
    %453 = vmatpush.bf16.msra.mxu0 %v438
    %454 = vmatpush.bf16.msra.mxu0 %v437
    %455 = vmatmul.bf16.gmra.mxu0 %v442
    %v456 = vpop.f32.mrf.mxu0
    %v457 = vadd.f32 0.0, %v456
    %v458 = vpop.f32.mrf.mxu0
    %v459 = vadd.f32 0.0, %v458
    %460 = vmatmul.bf16.gmra.mxu0 %v445
    %v461 = vpop.f32.mrf.mxu0
    %v462 = vadd.f32 0.0, %v461
    %v463 = vpop.f32.mrf.mxu0
    %v464 = vadd.f32 0.0, %v463
    %465 = vdwg.mxu0
    %v466 = vld [vmem:[%s4] sm:$0xf]
    %v467 = vld [vmem:[%s4 + $0x4] sm:$0xf]
    %v468 = vld [vmem:[%s4 + $0x8] sm:$0xf]
    %v469 = vld [vmem:[%s4 + $0xc] sm:$0xf]
    %v470 = vld [vmem:[%s4 + $0x10] sm:$0xf]
    %v471 = vld [vmem:[%s4 + $0x14] sm:$0xf]
    %v472 = vld [vmem:[%s4 + $0x18] sm:$0xf]
    %v473 = vld [vmem:[%s4 + $0x1c] sm:$0xf]
    %v474 = vpack.c.bf16 %v459, %v457
    %v475 = vpack.c.bf16 %v464, %v462
    %v484 = vunpack.c.l.b16 %v466
    %v485 = vunpack.c.l.b16 %v467
    %v486 = vunpack.c.l.b16 %v468
    %v487 = vunpack.c.l.b16 %v469
    %v488 = vunpack.c.l.b16 %v470
    %v489 = vunpack.c.l.b16 %v471
    %v490 = vunpack.c.l.b16 %v472
    %v491 = vunpack.c.l.b16 %v473
    %v492 = vpack.c.b16 %v485, %v484
    %v493 = vpack.c.b16 %v487, %v486
    %v494 = vpack.c.b16 %v489, %v488
    %v495 = vpack.c.b16 %v491, %v490
    %v497 = vsel %vm229, %v492, 0
    %v500 = vsel %vm229, %v493, 0
    %v503 = vsel %vm229, %v494, 0
    %v506 = vsel %vm229, %v495, 0
    %508 = vmatpush.bf16.msra.mxu0 0
    %509 = vmatpush.bf16.msra.mxu0 0
    %510 = vmatpush.bf16.msra.mxu0 0
    %511 = vmatpush.bf16.msra.mxu0 0
    %512 = vmatpush.bf16.msra.mxu0 0
    %513 = vmatpush.bf16.msra.mxu0 0
    %514 = vmatpush.bf16.msra.mxu0 %v475
    %515 = vmatpush.bf16.msra.mxu0 %v474
    %516 = vmatmul.bf16.gmra.mxu0 %v497
    %v517 = vpop.f32.mrf.mxu0
    %v518 = vadd.f32 0.0, %v517
    %v519 = vpop.f32.mrf.mxu0
    %v520 = vadd.f32 0.0, %v519
    %521 = vmatmul.bf16.gmra.mxu0 %v500
    %v522 = vpop.f32.mrf.mxu0
    %v523 = vadd.f32 0.0, %v522
    %v524 = vpop.f32.mrf.mxu0
    %v525 = vadd.f32 0.0, %v524
    %526 = vmatmul.bf16.gmra.mxu0 %v503
    %v527 = vpop.f32.mrf.mxu0
    %v528 = vadd.f32 0.0, %v527
    %v529 = vpop.f32.mrf.mxu0
    %v530 = vadd.f32 0.0, %v529
    %531 = vmatmul.bf16.gmra.mxu0 %v506
    %v532 = vpop.f32.mrf.mxu0
    %v533 = vadd.f32 0.0, %v532
    %v534 = vpop.f32.mrf.mxu0
    %v535 = vadd.f32 0.0, %v534
    %536 = vdwg.mxu0
    %v537 = vld [vmem:[%s15] sm:$0xf]
    %v538 = vld [vmem:[%s15 + $0x4] sm:$0xf]
    %v541 = vunpack.c.l.b16 %v537
    %v542 = vunpack.c.l.b16 %v538
    %v543 = vpack.c.b16 %v542, %v541
    %v546 = vsel %vm190, %v136, 0
    %v549 = vsel %vm190, %v137, 0
    %v552 = vsel %vm190, %v138, 0
    %v555 = vsel %vm190, %v139, 0
    %557 = vmatpush.bf16.msra.mxu0 0
    %558 = vmatpush.bf16.msra.mxu0 0
    %559 = vmatpush.bf16.msra.mxu0 0
    %560 = vmatpush.bf16.msra.mxu0 0
    %561 = vmatpush.bf16.msra.mxu0 0
    %562 = vmatpush.bf16.msra.mxu0 0
    %563 = vmatpush.bf16.msra.mxu0 0
    %564 = vmatpush.bf16.msra.mxu0 %v543
    %565 = vmatmul.bf16.gmra.mxu0 %v546
    %v566 = vpop.f32.mrf.mxu0
    %v567 = vadd.f32 %v518, %v566
    %v568 = vpop.f32.mrf.mxu0
    %v569 = vadd.f32 %v520, %v568
    %570 = vmatmul.bf16.gmra.mxu0 %v549
    %v571 = vpop.f32.mrf.mxu0
    %v572 = vadd.f32 %v523, %v571
    %v573 = vpop.f32.mrf.mxu0
    %v574 = vadd.f32 %v525, %v573
    %575 = vmatmul.bf16.gmra.mxu0 %v552
    %v576 = vpop.f32.mrf.mxu0
    %v577 = vadd.f32 %v528, %v576
    %v578 = vpop.f32.mrf.mxu0
    %v579 = vadd.f32 %v530, %v578
    %580 = vmatmul.bf16.gmra.mxu0 %v555
    %v581 = vpop.f32.mrf.mxu0
    %v582 = vadd.f32 %v533, %v581
    %v583 = vpop.f32.mrf.mxu0
    %v584 = vadd.f32 %v535, %v583
    %585 = vdwg.mxu0
    %v586 = vld [vmem:[%s17] sm:$0x1]
    %v588 = vperm.slane %v586, 0
    %v590 = vadd.f32 %v567, %v588
    %v591 = vadd.f32 %v569, %v588
    %v592 = vadd.f32 %v572, %v588
    %v593 = vadd.f32 %v574, %v588
    %v594 = vadd.f32 %v577, %v588
    %v595 = vadd.f32 %v579, %v588
    %v596 = vadd.f32 %v582, %v588
    %v597 = vadd.f32 %v584, %v588
    %v598 = vmax.f32 %v590, 0.0
    %v599 = vmax.f32 %v591, 0.0
    %v600 = vmax.f32 %v592, 0.0
    %v601 = vmax.f32 %v593, 0.0
    %v602 = vmax.f32 %v594, 0.0
    %v603 = vmax.f32 %v595, 0.0
    %v604 = vmax.f32 %v596, 0.0
    %v605 = vmax.f32 %v597, 0.0
    %v606 = vld [vmem:[%s5] sm:$0xff]
    %v607 = vld [vmem:[%s5 + $0x8] sm:$0xff]
    %v608 = vld [vmem:[%s5 + $0x10] sm:$0xff]
    %v610 = vsel %vm150, %v606, 0
    %v613 = vsel %vm150, %v607, 0
    %v616 = vsel %vm150, %v608, 0
    %618 = vmatpush.msra.mxu0 0.0
    %619 = vmatpush.msra.mxu0 0.0
    %620 = vmatpush.msra.mxu0 0.0
    %621 = vmatpush.msra.mxu0 0.0
    %622 = vmatpush.msra.mxu0 0.0
    %623 = vmatpush.msra.mxu0 0.0
    %624 = vmatpush.msra.mxu0 0.0
    %625 = vmatpush.msra.mxu0 0.0
    %626 = vmatpush.msra.mxu0 %v605
    %627 = vmatpush.msra.mxu0 %v604
    %628 = vmatpush.msra.mxu0 %v603
    %629 = vmatpush.msra.mxu0 %v602
    %630 = vmatpush.msra.mxu0 %v601
    %631 = vmatpush.msra.mxu0 %v600
    %632 = vmatpush.msra.mxu0 %v599
    %633 = vmatpush.msra.mxu0 %v598
    %634 = vmatmul.f32.gmra.mxu0 %v610
    %v635 = vpop.f32.mrf.mxu0
    %v636 = vadd.f32 0.0, %v635
    %637 = vmatmul.f32.gmra.mxu0 %v613
    %v638 = vpop.f32.mrf.mxu0
    %v639 = vadd.f32 0.0, %v638
    %640 = vmatmul.f32.gmra.mxu0 %v616
    %v641 = vpop.f32.mrf.mxu0
    %v642 = vadd.f32 0.0, %v641
    %643 = vdwg.mxu0
    %644 = vst.msk [vmem:[#allocation2] sm:$0xff] %vm229, %v636
    %645 = vst.msk [vmem:[#allocation2 + $0x8] sm:$0xff] %vm229, %v639
    %646 = vst.msk [vmem:[#allocation2 + $0x10] sm:$0xff] %vm229, %v642
    // Predicated region
    $region74: #{tpu_custom_call.1} parent=1 // pred_check
      _
    $region75: #{tpu_custom_call.1} parent=1 // pred_check_branch
      %648 = sbr.rel (0) target = $region77
    $region76: #{tpu_custom_call.1} parent=1 // pred_region
      %650 = vsyncadd [#allocation3], 0
      %s651 = sshll.u32 [#allocation2], 4
      %s652 = int_to_ptr.vmem [resolvable:$true] %s651
      %s653 = sshll.u32 %s18, 4
      %s654 = int_to_ptr.hbm [resolvable:$true] %s653
      %659 = dma.vmem_to_hbm [thread:$0]  %s652, 384, %s654, [#allocation3], 128, 128, 8
    $region77: #{tpu_custom_call.1} parent=1 // pred_fallthru
      _
    // Predicated region
    $region78: #{tpu_custom_call.1} parent=1 // pred_check
      _
    $region79: #{tpu_custom_call.1} parent=1 // pred_check_branch
      %661 = sbr.rel (0) target = $region81
    $region80: #{tpu_custom_call.1} parent=1 // pred_region
      %663 = dma.done [#allocation3], 384
    $region81: #{tpu_custom_call.1} parent=1 // pred_fallthru
      _
    %664 = vsyncpa [#allocation3], 1

</llo_original>
